<compile_context>
chip_gen: v6e
topology: v6e:2x2x1
jax: 0.10.0
libtpu: 0.0.40
codegen_flags: <defaults>
</compile_context>

<pallas_src>
import functools

import numpy as np

import jax
import jax.numpy as jnp
from jax.experimental import pallas as pl
from jax.experimental.pallas import tpu as pltpu


_NEG = -1.0e30  # finite "-inf" for padded vocab columns (keeps softmax exact, no NaNs)


def _round_up(x, m):
    return ((x + m - 1) // m) * m


# ----------------------------------------------------------------------------------
# Fused kernel: linear (f32 MXU acc) + bias + log_softmax epilogue, narrow stores
# ----------------------------------------------------------------------------------
def _readout_kernel(x_ref, w_ref, b_ref, lp_ref, logit_ref, *, vocab):
    # x: (bm, H) f32 | w: (H, Vp) f32 (cols >= vocab are 0) | b: (1, Vp) f32 (cols >= vocab = -1e30)
    z = jnp.dot(x_ref[...], w_ref[...], preferred_element_type=jnp.float32)
    z = z + b_ref[...]
    m = jnp.max(z, axis=-1, keepdims=True)          # padded cols (-1e30) never win the max
    e = jnp.exp(z - m)                              # padded cols underflow to exactly 0
    s = jnp.sum(e, axis=-1, keepdims=True)
    lp = (z - m) - jnp.log(s)
    # Narrow (vocab-wide) stores: only the real columns ever hit HBM.
    lp_ref[...] = lp[:, :vocab]
    logit_ref[...] = z[:, :vocab]


# ----------------------------------------------------------------------------------
# Params: PyTorch nn.Linear-style init; weight/bias padded to lane-dense tiles ONCE
# ----------------------------------------------------------------------------------
def init_mlp_decoder_params(key, hidden_dim, vocab=33):
    k = 1.0 / np.sqrt(hidden_dim)
    kw, kb = jax.random.split(key)
    w = jax.random.uniform(kw, (hidden_dim, vocab), jnp.float32, -k, k)
    b = jax.random.uniform(kb, (vocab,), jnp.float32, -k, k)

    Vp = _round_up(vocab, 128)  # lane-dense weight/bias tile for the MXU; K not padded
    w_p = jnp.zeros((hidden_dim, Vp), jnp.float32).at[:, :vocab].set(w)
    b_p = jnp.full((1, Vp), _NEG, jnp.float32).at[0, :vocab].set(b)
    return {"w": w, "b": b, "w_p": w_p, "b_p": b_p,
            "hidden_dim": hidden_dim, "vocab": vocab, "Vp": Vp}


def _row_tiling(M, block_m_max=1024, row_align=8):
    # Divisor-aware tiling: bounds row padding to < row_align rows per grid step,
    # keeps tiles big on single-TC chips, even step count for v7x's 2 TensorCores.
    n = max(1, pl.cdiv(M, block_m_max))
    if n > 1 and (n % 2):
        n += 1
    bm = _round_up(max(pl.cdiv(M, n), 1), row_align)
    Mp = n * bm
    return bm, n, Mp


# ----------------------------------------------------------------------------------
# Forward:  h_V (..., hidden_dim)  ->  (log_probs, logits)  each (..., vocab), f32
# ----------------------------------------------------------------------------------
def mlp_decoder_forward(params, h_V, block_m_max=1024):
    hidden_dim, vocab, Vp = params["hidden_dim"], params["vocab"], params["Vp"]

    lead = h_V.shape[:-1]
    x2d = h_V.reshape(-1, h_V.shape[-1]).astype(jnp.float32)
    M, H = x2d.shape
    assert H == hidden_dim

    bm, n_steps, Mp = _row_tiling(M, block_m_max)
    if Mp != M:
        x2d = jnp.pad(x2d, ((0, Mp - M), (0, 0)))

    cost = pl.CostEstimate(
        flops=2 * Mp * H * Vp,
        transcendentals=Mp * (Vp + 1),
        bytes_accessed=Mp * H * 4 + H * Vp * 4 + Vp * 4 + 2 * Mp * vocab * 4,
    )

    kernel = functools.partial(_readout_kernel, vocab=vocab)

    log_probs_p, logits_p = pl.pallas_call(
        kernel,
        out_shape=(jax.ShapeDtypeStruct((Mp, vocab), jnp.float32),
                   jax.ShapeDtypeStruct((Mp, vocab), jnp.float32)),
        grid=(n_steps,),
        in_specs=[
            pl.BlockSpec((bm, H), lambda i: (i, 0)),    # activations, row-tiled, f32, K un-padded
            pl.BlockSpec((H, Vp), lambda i: (0, 0)),    # weight fully resident in VMEM
            pl.BlockSpec((1, Vp), lambda i: (0, 0)),    # bias (padded cols = -1e30)
        ],
        out_specs=(pl.BlockSpec((bm, vocab), lambda i: (i, 0)),
                   pl.BlockSpec((bm, vocab), lambda i: (i, 0))),
        compiler_params=pltpu.CompilerParams(dimension_semantics=("parallel",)),
        cost_estimate=cost,
    )(x2d, params["w_p"], params["b_p"])

    if Mp != M:
        log_probs_p = log_probs_p[:M]
        logits_p = logits_p[:M]
    log_probs = log_probs_p.reshape(*lead, vocab)
    logits = logits_p.reshape(*lead, vocab)
    return log_probs, logits


# ----------------------------------------------------------------------------------
# Demo
# ----------------------------------------------------------------------------------
if __name__ == "__main__":
    hidden_dim = 32
    vocab = 33
    batch, seq = 2, 8

    key = jax.random.PRNGKey(0)
    k_param, k_x = jax.random.split(key)
    params = init_mlp_decoder_params(k_param, hidden_dim, vocab)
    h_V = jax.random.normal(k_x, (batch, seq, hidden_dim), jnp.float32)

    log_probs, logits = mlp_decoder_forward(params, h_V)
    jax.block_until_ready((log_probs, logits))

    # reference (pure JAX, f32)
    logits_ref = h_V @ params["w"] + params["b"]
    log_probs_ref = jax.nn.log_softmax(logits_ref, axis=-1)

    assert log_probs.shape == (batch, seq, vocab)
    assert logits.shape == (batch, seq, vocab)
    assert bool(jnp.all(jnp.isfinite(log_probs))) and bool(jnp.all(jnp.isfinite(logits)))
    assert bool(jnp.max(jnp.abs(logits - logits_ref)) < 1e-2)
    assert bool(jnp.max(jnp.abs(log_probs - log_probs_ref)) < 1e-2)
    # log_softmax rows must normalize
    assert bool(jnp.max(jnp.abs(jnp.sum(jnp.exp(log_probs), axis=-1) - 1.0)) < 1e-4)

    print("KERNEL_OK")
</pallas_src>

<mosaic_0001>
module attributes {stable_mosaic.version = 11 : i64} {
  func.func @_readout_kernel(%arg0: i32, %arg1: memref<16x32xf32, #tpu.memory_space<vmem>>, %arg2: memref<32x128xf32, #tpu.memory_space<vmem>>, %arg3: memref<1x128xf32, #tpu.memory_space<vmem>>, %arg4: memref<16x33xf32, #tpu.memory_space<vmem>>, %arg5: memref<16x33xf32, #tpu.memory_space<vmem>>) attributes {dimension_semantics = [#tpu.dimension_semantics<parallel>], iteration_bounds = array<i64: 1>, scalar_prefetch = 0 : i64, scratch_operands = 0 : i64, tpu.core_type = #tpu.core_type<tc>, window_params = [{transform_indices = @transform_0, window_bounds = array<i64: 16, 32>}, {pipeline_mode = #tpu.pipeline_mode<synchronous>, transform_indices = @transform_1, window_bounds = array<i64: 32, 128>}, {pipeline_mode = #tpu.pipeline_mode<synchronous>, transform_indices = @transform_2, window_bounds = array<i64: 1, 128>}, {transform_indices = @transform_3, window_bounds = array<i64: 16, 33>}, {transform_indices = @transform_4, window_bounds = array<i64: 16, 33>}]} {
    %c0 = arith.constant 0 : index
    %c0_0 = arith.constant 0 : index
    %0 = vector.load %arg1[%c0, %c0_0] : memref<16x32xf32, #tpu.memory_space<vmem>>, vector<16x32xf32>
    %c0_1 = arith.constant 0 : index
    %c0_2 = arith.constant 0 : index
    %1 = vector.load %arg2[%c0_1, %c0_2] : memref<32x128xf32, #tpu.memory_space<vmem>>, vector<32x128xf32>
    %cst = arith.constant dense<0.000000e+00> : vector<16x128xf32>
    %2 = tpu.matmul %0, %1, %cst {dimension_numbers = #tpu.dot_dimension_numbers<[1], [0], [0], [1], [0, 0, 1, 1], [], []>} : vector<16x32xf32>, vector<32x128xf32>, vector<16x128xf32> -> vector<16x128xf32>
    %c0_3 = arith.constant 0 : index
    %c0_4 = arith.constant 0 : index
    %3 = vector.load %arg3[%c0_3, %c0_4] : memref<1x128xf32, #tpu.memory_space<vmem>>, vector<1x128xf32>
    %4 = vector.broadcast %3 : vector<1x128xf32> to vector<16x128xf32>
    %5 = arith.addf %2, %4 : vector<16x128xf32>
    %cst_5 = arith.constant dense<0xFF800000> : vector<16xf32>
    %6 = vector.multi_reduction <maximumf>, %5, %cst_5 [1] : vector<16x128xf32> to vector<16xf32>
    %7 = vector.shape_cast %6 : vector<16xf32> to vector<16x1xf32>
    %8 = vector.broadcast %7 : vector<16x1xf32> to vector<16x128xf32>
    %9 = arith.subf %5, %8 : vector<16x128xf32>
    %10 = math.exp %9 : vector<16x128xf32>
    %cst_6 = arith.constant dense<0.000000e+00> : vector<16xf32>
    %11 = vector.multi_reduction <add>, %10, %cst_6 [1] : vector<16x128xf32> to vector<16xf32>
    %12 = vector.shape_cast %11 : vector<16xf32> to vector<16x1xf32>
    %13 = vector.broadcast %7 : vector<16x1xf32> to vector<16x128xf32>
    %14 = arith.subf %5, %13 : vector<16x128xf32>
    %15 = math.log %12 : vector<16x1xf32>
    %16 = vector.broadcast %15 : vector<16x1xf32> to vector<16x128xf32>
    %17 = arith.subf %14, %16 : vector<16x128xf32>
    %18 = vector.extract_strided_slice %17 {offsets = [0, 0], sizes = [16, 33], strides = [1, 1]} : vector<16x128xf32> to vector<16x33xf32>
    %c0_7 = arith.constant 0 : index
    %c0_8 = arith.constant 0 : index
    %19 = vector.load %arg4[%c0_7, %c0_8] : memref<16x33xf32, #tpu.memory_space<vmem>>, vector<16x33xf32>
    tpu.vector_store %arg4[%c0_7, %c0_8], %18 {strides = array<i32>} : memref<16x33xf32, #tpu.memory_space<vmem>>, vector<16x33xf32>,
    %20 = vector.extract_strided_slice %5 {offsets = [0, 0], sizes = [16, 33], strides = [1, 1]} : vector<16x128xf32> to vector<16x33xf32>
    %c0_9 = arith.constant 0 : index
    %c0_10 = arith.constant 0 : index
    %21 = vector.load %arg5[%c0_9, %c0_10] : memref<16x33xf32, #tpu.memory_space<vmem>>, vector<16x33xf32>
    tpu.vector_store %arg5[%c0_9, %c0_10], %20 {strides = array<i32>} : memref<16x33xf32, #tpu.memory_space<vmem>>, vector<16x33xf32>,
    return
  }
  func.func @transform_0(%arg0: i32) -> (i32, i32) {
    %c0_i32 = arith.constant 0 : i32
    %c0_i32_0 = arith.constant 0 : i32
    return %arg0, %c0_i32 : i32, i32
  }
  func.func @transform_1(%arg0: i32) -> (i32, i32) {
    %c0_i32 = arith.constant 0 : i32
    %c0_i32_0 = arith.constant 0 : i32
    %c0_i32_1 = arith.constant 0 : i32
    return %c0_i32, %c0_i32_0 : i32, i32
  }
  func.func @transform_2(%arg0: i32) -> (i32, i32) {
    %c0_i32 = arith.constant 0 : i32
    %c0_i32_0 = arith.constant 0 : i32
    %c0_i32_1 = arith.constant 0 : i32
    return %c0_i32, %c0_i32_0 : i32, i32
  }
  func.func @transform_3(%arg0: i32) -> (i32, i32) {
    %c0_i32 = arith.constant 0 : i32
    %c0_i32_0 = arith.constant 0 : i32
    return %arg0, %c0_i32 : i32, i32
  }
  func.func @transform_4(%arg0: i32) -> (i32, i32) {
    %c0_i32 = arith.constant 0 : i32
    %c0_i32_0 = arith.constant 0 : i32
    return %arg0, %c0_i32 : i32, i32
  }
}

</mosaic_0001>

<llo_original>
// kernel: tpu_custom_call.1
$region0: #{tpu_custom_call.1}
  #allocation0 [shape = 'u32[]', space=smem, size = 0x4, offset = 0x4, fixed_abs, tag = 'smem constant byte address 0x4 - core index']
  #allocation1 [shape = 'u32[144,128]{1,0:T(1,128)}', space=vmem, size = 0x12000, scoped, tag = 'internal scratch']
  %s0 = inlined_call_operand.hbm [shape: f32[16,32], index: 0, kind: input, shape index: {}]
  %s1 = inlined_call_operand.hbm [shape: f32[32,128], index: 1, kind: input, shape index: {}]
  %s2 = inlined_call_operand.vmem [shape: f32[1,128], index: 2, kind: input, shape index: {}]
  %s3 = inlined_call_operand.hbm [shape: f32[16,33], index: 3, kind: output, shape index: {0}]
  %s4 = inlined_call_operand.hbm [shape: f32[16,33], index: 4, kind: output, shape index: {1}]
  %5 = xla_tuple %s3, %s4
  %s6 = sld [smem:[#allocation0]]
  $region38: #{tpu_custom_call.1} parent=0
    _
  %s8 = ssub.s32 1, %s6
  %s9 = scalar_select 0, %s8, %s6
  $region1: #{tpu_custom_call.1} parent=0
    #allocation2 [shape = 'u8[8192]{0}', space=vmem, size = 0x2000, scoped, tag = 'input window, operand 0, single buffered']
    #allocation3 [shape = 's32[1]{0}', space=sflag, size = 0x4, scoped, tag = 'scoped memory for tpu_custom_call.1']
    #allocation4 [shape = 's32[1]{0}', space=sflag, size = 0x4, scoped, tag = 'scoped memory for tpu_custom_call.1']
    #allocation5 [shape = 'u8[16384]{0}', space=vmem, size = 0x4000, scoped, tag = 'input window, operand 1, single buffered']
    #allocation6 [shape = 's32[1]{0}', space=sflag, size = 0x4, scoped, tag = 'scoped memory for tpu_custom_call.1']
    #allocation7 [shape = 'u8[8192]{0}', space=vmem, size = 0x2000, scoped, tag = 'output window, operand 0, single buffered']
    #allocation8 [shape = 'u8[8192]{0}', space=vmem, size = 0x2000, scoped, tag = 'output window, operand 1, single buffered']
    #allocation9 [shape = 's32[1]{0}', space=sflag, size = 0x4, scoped, tag = 'scoped memory for tpu_custom_call.1']
    %10 = vsyncpa [#allocation3], 0
    %11 = vsyncpa [#allocation6], 0
    %12 = vsyncpa [#allocation4], 0
    %13 = vsyncpa [#allocation9], 0
    // Predicated region
    $region2: #{tpu_custom_call.1} parent=1 // pred_check
      _
    $region3: #{tpu_custom_call.1} parent=1 // pred_check_branch
      %15 = sbr.rel (0) target = $region5
    $region4: #{tpu_custom_call.1} parent=1 // pred_region
      %s17 = ssub.s32 256, 256
      %18 = vsyncadd [#allocation3], %s17
      %s19 = sshll.u32 [#allocation2], 4
      %s20 = int_to_ptr.vmem [resolvable:$true] %s19
      %25 = dma.hbm_to_vmem [thread:$0]  %s0, 256, %s20, [#allocation3], 128, 128, 8
    $region5: #{tpu_custom_call.1} parent=1 // pred_fallthru
      _
    // Predicated region
    $region6: #{tpu_custom_call.1} parent=1 // pred_check
      _
    $region7: #{tpu_custom_call.1} parent=1 // pred_check_branch
      %27 = sbr.rel (0) target = $region9
    $region8: #{tpu_custom_call.1} parent=1 // pred_region
      %s29 = ssub.s32 512, 512
      %30 = vsyncadd [#allocation6], %s29
      %s31 = sshll.u32 [#allocation5], 4
      %s32 = int_to_ptr.vmem [resolvable:$true] %s31
      %37 = dma.hbm_to_vmem [thread:$0]  %s1, 512, %s32, [#allocation6], 128, 128, 8
    $region9: #{tpu_custom_call.1} parent=1 // pred_fallthru
      _
    // Predicated region
    $region10: #{tpu_custom_call.1} parent=1 // pred_check
      _
    $region11: #{tpu_custom_call.1} parent=1 // pred_check_branch
      %39 = sbr.rel (0) target = $region13
    $region12: #{tpu_custom_call.1} parent=1 // pred_region
      _
    $region13: #{tpu_custom_call.1} parent=1 // pred_fallthru
      _
    // Predicated region
    $region14: #{tpu_custom_call.1} parent=1 // pred_check
      _
    $region15: #{tpu_custom_call.1} parent=1 // pred_check_branch
      %41 = sbr.rel (0) target = $region17
    $region16: #{tpu_custom_call.1} parent=1 // pred_region
      %42 = dma.done [#allocation3], 256
    $region17: #{tpu_custom_call.1} parent=1 // pred_fallthru
      _
    // Predicated region
    $region18: #{tpu_custom_call.1} parent=1 // pred_check
      _
    $region19: #{tpu_custom_call.1} parent=1 // pred_check_branch
      %44 = sbr.rel (0) target = $region21
    $region20: #{tpu_custom_call.1} parent=1 // pred_region
      %45 = dma.done [#allocation6], 512
    $region21: #{tpu_custom_call.1} parent=1 // pred_fallthru
      _
    %v46 = vld [vmem:[#allocation2] sm:$0xff]
    %v47 = vld [vmem:[#allocation2 + $0x8] sm:$0xff]
    %v48 = vld [vmem:[#allocation5] sm:$0xff]
    %v49 = vld [vmem:[#allocation5 + $0x8] sm:$0xff]
    %v50 = vld [vmem:[#allocation5 + $0x10] sm:$0xff]
    %v51 = vld [vmem:[#allocation5 + $0x18] sm:$0xff]
    %v52 = vld [vmem:[%s2] sm:$0x1]
    %v54 = vlaneseq
    %v55 = vshrl.u32 %v54, 7
    %v56 = vsub.s32 0, %v55
    %v57 = vrot.slane %v52, %v56
    %vm59 = vcmask 261120
    %v61 = vsel %vm59, %v46, 0
    %v64 = vsel %vm59, %v47, 0
    %66 = vmatprep.subr.mxu0 0.0
    %67 = vmatpush1.msra.mxu0 0.0
    %68 = vmatprep.subr.mxu0 0.0
    %69 = vmatpush1.msra.mxu0 0.0
    %70 = vmatprep.subr.mxu0 0.0
    %71 = vmatpush1.msra.mxu0 0.0
    %72 = vmatprep.subr.mxu0 0.0
    %73 = vmatpush1.msra.mxu0 0.0
    %74 = vmatprep.subr.mxu0 0.0
    %75 = vmatpush1.msra.mxu0 0.0
    %76 = vmatprep.subr.mxu0 0.0
    %77 = vmatpush1.msra.mxu0 0.0
    %78 = vmatprep.subr.mxu0 0.0
    %79 = vmatpush1.msra.mxu0 0.0
    %80 = vmatprep.subr.mxu0 0.0
    %81 = vmatpush1.msra.mxu0 0.0
    %82 = vmatprep.subr.mxu0 0.0
    %83 = vmatpush1.msra.mxu0 0.0
    %84 = vmatprep.subr.mxu0 0.0
    %85 = vmatpush1.msra.mxu0 0.0
    %86 = vmatprep.subr.mxu0 0.0
    %87 = vmatpush1.msra.mxu0 0.0
    %88 = vmatprep.subr.mxu0 0.0
    %89 = vmatpush1.msra.mxu0 0.0
    %90 = vmatprep.subr.mxu0 0.0
    %91 = vmatpush1.msra.mxu0 %v51
    %92 = vmatprep.subr.mxu0 0.0
    %93 = vmatpush1.msra.mxu0 %v50
    %94 = vmatprep.subr.mxu0 0.0
    %95 = vmatpush1.msra.mxu0 %v49
    %96 = vmatprep.subr.mxu0 0.0
    %97 = vmatpush1.msra.mxu0 %v48
    %98 = vmatprep.subr.mxu0 0.0
    %99 = vmatpush2.msra.mxu0 0.0
    %100 = vmatprep.subr.mxu0 0.0
    %101 = vmatpush2.msra.mxu0 0.0
    %102 = vmatprep.subr.mxu0 0.0
    %103 = vmatpush2.msra.mxu0 0.0
    %104 = vmatprep.subr.mxu0 0.0
    %105 = vmatpush2.msra.mxu0 0.0
    %106 = vmatprep.subr.mxu0 0.0
    %107 = vmatpush2.msra.mxu0 0.0
    %108 = vmatprep.subr.mxu0 0.0
    %109 = vmatpush2.msra.mxu0 0.0
    %110 = vmatprep.subr.mxu0 0.0
    %111 = vmatpush2.msra.mxu0 0.0
    %112 = vmatprep.subr.mxu0 0.0
    %113 = vmatpush2.msra.mxu0 0.0
    %114 = vmatprep.subr.mxu0 0.0
    %115 = vmatpush2.msra.mxu0 0.0
    %116 = vmatprep.subr.mxu0 0.0
    %117 = vmatpush2.msra.mxu0 0.0
    %118 = vmatprep.subr.mxu0 0.0
    %119 = vmatpush2.msra.mxu0 0.0
    %120 = vmatprep.subr.mxu0 0.0
    %121 = vmatpush2.msra.mxu0 0.0
    %122 = vmatprep.subr.mxu0 0.0
    %123 = vmatpush2.msra.mxu0 0.0
    %124 = vmatprep.subr.mxu0 0.0
    %125 = vmatpush2.msra.mxu0 0.0
    %126 = vmatprep.subr.mxu0 0.0
    %127 = vmatpush2.msra.mxu0 0.0
    %128 = vmatprep.subr.mxu0 0.0
    %129 = vmatpush2.msra.mxu0 0.0
    %130 = vmatprep.mubr.f32.mxu0 0.0
    %131 = vmatmul.mubr.f32.gmra.mxu0 %v61
    %v132 = vpop.f32.mrf.mxu0
    %v133 = vadd.f32 %v57, %v132
    %v134 = vpop.f32.mrf.mxu0
    %135 = vmatprep.mubr.f32.mxu0 0.0
    %136 = vmatmul.mubr.f32.gmra.mxu0 %v64
    %v137 = vpop.f32.mrf.mxu0
    %v138 = vadd.f32 %v57, %v137
    %v139 = vpop.f32.mrf.mxu0
    %140 = vdwg.mxu0
    %141 = vmax.xlane.f32.xlu0 %v133
    %v142 = vpop.xlane.xlu0 %141
    %143 = vmax.xlane.f32.xlu0 %v138
    %v144 = vpop.xlane.xlu0 %143
    %v145 = vsub.f32 %v133, %v142
    %v146 = vsub.f32 %v138, %v144
    %v147 = vmul.f32 %v145, 1.442695
    %v148 = vpow.pop %v147
    %v149 = vmul.f32 %v146, 1.442695
    %v150 = vpow.pop %v149
    %151 = vadd.xlane.f32.xlu0 %v148
    %v152 = vpop.xlane.xlu0 %151
    %153 = vadd.xlane.f32.xlu0 %v150
    %v154 = vpop.xlane.xlu0 %153
    %v155 = vlog2.pop %v152
    %v156 = vmul.f32 %v155, 0.6931472
    %v157 = vlog2.pop %v154
    %v158 = vmul.f32 %v157, 0.6931472
    %v159 = vsub.f32 %v145, %v156
    %v160 = vsub.f32 %v146, %v158
    %vm161 = vcmask 269312
    %162 = vst.msk [vmem:[#allocation7] sm:$0xff] %vm161, %v159
    %163 = vst.msk [vmem:[#allocation7 + $0x8] sm:$0xff] %vm161, %v160
    %164 = vst.msk [vmem:[#allocation8] sm:$0xff] %vm161, %v133
    %165 = vst.msk [vmem:[#allocation8 + $0x8] sm:$0xff] %vm161, %v138
    // Predicated region
    $region22: #{tpu_custom_call.1} parent=1 // pred_check
      _
    $region23: #{tpu_custom_call.1} parent=1 // pred_check_branch
      %167 = sbr.rel (0) target = $region25
    $region24: #{tpu_custom_call.1} parent=1 // pred_region
      %s169 = ssub.s32 256, 256
      %170 = vsyncadd [#allocation4], %s169
      %s171 = sshll.u32 [#allocation7], 4
      %s172 = int_to_ptr.vmem [resolvable:$true] %s171
      %177 = dma.vmem_to_hbm [thread:$0]  %s172, 256, %s3, [#allocation4], 128, 128, 8
    $region25: #{tpu_custom_call.1} parent=1 // pred_fallthru
      _
    // Predicated region
    $region26: #{tpu_custom_call.1} parent=1 // pred_check
      _
    $region27: #{tpu_custom_call.1} parent=1 // pred_check_branch
      %179 = sbr.rel (0) target = $region29
    $region28: #{tpu_custom_call.1} parent=1 // pred_region
      %s181 = ssub.s32 256, 256
      %182 = vsyncadd [#allocation9], %s181
      %s183 = sshll.u32 [#allocation8], 4
      %s184 = int_to_ptr.vmem [resolvable:$true] %s183
      %189 = dma.vmem_to_hbm [thread:$0]  %s184, 256, %s4, [#allocation9], 128, 128, 8
    $region29: #{tpu_custom_call.1} parent=1 // pred_fallthru
      _
    // Predicated region
    $region30: #{tpu_custom_call.1} parent=1 // pred_check
      _
    $region31: #{tpu_custom_call.1} parent=1 // pred_check_branch
      %191 = sbr.rel (0) target = $region33
    $region32: #{tpu_custom_call.1} parent=1 // pred_region
      %192 = dma.done [#allocation4], 256
    $region33: #{tpu_custom_call.1} parent=1 // pred_fallthru
      _
    // Predicated region
    $region34: #{tpu_custom_call.1} parent=1 // pred_check
      _
    $region35: #{tpu_custom_call.1} parent=1 // pred_check_branch
      %194 = sbr.rel (0) target = $region37
    $region36: #{tpu_custom_call.1} parent=1 // pred_region
      %195 = dma.done [#allocation9], 256
    $region37: #{tpu_custom_call.1} parent=1 // pred_fallthru
      _
    %196 = vsyncpa [#allocation3], 1
    %197 = vsyncpa [#allocation6], 1
    %198 = vsyncpa [#allocation4], 1
    %199 = vsyncpa [#allocation9], 1

</llo_original>
